<compile_context>
chip_gen: v6e
topology: v6e:2x2x1
jax: 0.10.0
libtpu: 0.0.40
codegen_flags: <defaults>
</compile_context>

<pallas_src>
import functools
import math

import jax
import jax.numpy as jnp
from jax.experimental import pallas as pl
from jax.experimental.pallas import tpu as pltpu

_VMEM_LIMIT = 64 * 1024 * 1024  # explicit budget; chunk sizes below stay well under it


# ---------------------------------------------------------------------------
# Small helpers
# ---------------------------------------------------------------------------

def _round_up(n, m):
    return ((n + m - 1) // m) * m


def _pick_chunk(n, target, multiple=1):
    """Largest divisor of n that is <= target and a multiple of `multiple`
    (falls back to n itself, which is always a legal full-extent block)."""
    if n <= target:
        return n
    for c in range(target, 0, -1):
        if n % c == 0 and c % multiple == 0:
            return c
    return n


# ---------------------------------------------------------------------------
# Pallas kernels
# ---------------------------------------------------------------------------

def input_proj_kernel(x_ref, w_t_ref, b_ref, gx_ref):
    """Tiled (Rb, D) @ (D, Nb) + bias — the hoisted per-timestep input projection."""
    x = x_ref[...].astype(jnp.float32)
    w = w_t_ref[...].astype(jnp.float32)
    gx_ref[...] = (jnp.dot(x, w, preferred_element_type=jnp.float32)
                   + b_ref[...].astype(jnp.float32)).astype(gx_ref.dtype)


def lstm_recurrence_kernel(*refs, emit_hseq, Hp):
    """Time-major LSTM recurrence over one (Tc, Bb, 4Hp) chunk of precomputed gates.

    refs (emit_hseq=True):  gx, w_hh_t, hseq_out, hlast_out, h_carry, c_carry
    refs (emit_hseq=False): gx, w_hh_t, hlast_out, h_carry, c_carry
    Gate order follows PyTorch: [i, f, g, o] along the 4Hp axis (stride Hp, lane-aligned).
    """
    if emit_hseq:
        gx_ref, w_hh_t_ref, hseq_ref, hlast_ref, h_c, c_c = refs
    else:
        gx_ref, w_hh_t_ref, hlast_ref, h_c, c_c = refs

    # Re-initialize the carried state at the first time chunk of each batch block
    # (matches torch.zeros h0/c0).
    @pl.when(pl.program_id(1) == 0)
    def _():
        h_c[...] = jnp.zeros_like(h_c)
        c_c[...] = jnp.zeros_like(c_c)

    w_hh_t = w_hh_t_ref[...].astype(jnp.float32)      # (Hp, 4Hp), hoisted out of the loop
    Tc = gx_ref.shape[0]

    def step(t, carry):
        h, c = carry
        # single MXU call per step; x-projection + bias were precomputed into gx
        gates = jnp.dot(h, w_hh_t, preferred_element_type=jnp.float32) + gx_ref[t]
        i = jax.nn.sigmoid(gates[:, 0 * Hp:1 * Hp])
        f = jax.nn.sigmoid(gates[:, 1 * Hp:2 * Hp])
        g = jnp.tanh(gates[:, 2 * Hp:3 * Hp])
        o = jax.nn.sigmoid(gates[:, 3 * Hp:4 * Hp])
        c_new = f * c + i * g
        h_new = o * jnp.tanh(c_new)
        if emit_hseq:
            hseq_ref[t] = h_new.astype(hseq_ref.dtype)   # lane-dense (Bb, Hp) store
        return h_new, c_new

    h, c = jax.lax.fori_loop(0, Tc, step, (h_c[...], c_c[...]), unroll=2)
    h_c[...] = h
    c_c[...] = c
    hlast_ref[...] = h.astype(hlast_ref.dtype)


def fc_softmax_kernel(h_ref, w_t_ref, b_ref, out_ref):
    """Linear(hidden, output_dim) on the final hidden state + Softmax(dim=1)."""
    h = h_ref[...].astype(jnp.float32)
    logits = (jnp.dot(h, w_t_ref[...].astype(jnp.float32),
                      preferred_element_type=jnp.float32)
              + b_ref[...].astype(jnp.float32))
    m = jnp.max(logits, axis=1, keepdims=True)
    e = jnp.exp(logits - m)
    out_ref[...] = (e / jnp.sum(e, axis=1, keepdims=True)).astype(out_ref.dtype)


# ---------------------------------------------------------------------------
# pallas_call wrappers
# ---------------------------------------------------------------------------

def _input_projection(x_rows, w_ih_t, bias):
    R, D = x_rows.shape
    N = w_ih_t.shape[1]                       # 4 * Hp, always a multiple of 512
    Rb = _pick_chunk(R, 256, multiple=8)
    Nb = _pick_chunk(N, 512, multiple=128)
    return pl.pallas_call(
        input_proj_kernel,
        out_shape=jax.ShapeDtypeStruct((R, N), jnp.float32),
        grid_spec=pltpu.PrefetchScalarGridSpec(
            num_scalar_prefetch=0,
            grid=(R // Rb, N // Nb),
            in_specs=[pl.BlockSpec((Rb, D), lambda r, n: (r, 0)),
                      pl.BlockSpec((D, Nb), lambda r, n: (0, n)),
                      pl.BlockSpec((1, Nb), lambda r, n: (0, n))],
            out_specs=pl.BlockSpec((Rb, Nb), lambda r, n: (r, n))),
        compiler_params=pltpu.CompilerParams(
            dimension_semantics=("parallel", "parallel"),
            vmem_limit_bytes=_VMEM_LIMIT),
    )(x_rows, w_ih_t, bias)


def _lstm_recurrence(gx_tm, w_hh_t, Hp, emit_hseq):
    T, B, four_hp = gx_tm.shape
    # Batch axis is "parallel" (lets v7x's second TensorCore take half the batch);
    # time axis is "arbitrary" (sequential carry in VMEM scratch).
    nb = 2 if (B % 16 == 0) else 1
    Bb = B // nb
    Tc = _pick_chunk(T, 128)
    nt = T // Tc

    kernel = functools.partial(lstm_recurrence_kernel, emit_hseq=emit_hseq, Hp=Hp)
    hlast_shape = jax.ShapeDtypeStruct((B, Hp), jnp.float32)
    hlast_spec = pl.BlockSpec((Bb, Hp), lambda b, t: (b, 0))
    if emit_hseq:
        out_shape = (jax.ShapeDtypeStruct((T, B, Hp), jnp.float32), hlast_shape)
        out_specs = (pl.BlockSpec((Tc, Bb, Hp), lambda b, t: (t, b, 0)), hlast_spec)
    else:
        out_shape = hlast_shape
        out_specs = hlast_spec

    return pl.pallas_call(
        kernel,
        out_shape=out_shape,
        grid_spec=pltpu.PrefetchScalarGridSpec(
            num_scalar_prefetch=0,
            grid=(nb, nt),
            in_specs=[pl.BlockSpec((Tc, Bb, four_hp), lambda b, t: (t, b, 0)),
                      pl.BlockSpec(w_hh_t.shape, lambda b, t: (0, 0))],
            out_specs=out_specs,
            scratch_shapes=[pltpu.VMEM((Bb, Hp), jnp.float32),
                            pltpu.VMEM((Bb, Hp), jnp.float32)]),
        compiler_params=pltpu.CompilerParams(
            dimension_semantics=("parallel", "arbitrary"),
            vmem_limit_bytes=_VMEM_LIMIT),
    )(gx_tm, w_hh_t)


def _pad_lstm_params(w_ih, w_hh, b_ih, b_hh, Hp, d_in_pad):
    """Transpose + zero-pad weights so gate slices sit on lane-tile boundaries.

    Padding is exact: padded rows/cols/bias are zero, so padded hidden columns never
    influence the real ones (and themselves stay exactly 0 through the recurrence).
    """
    four_h, d_in = w_ih.shape
    H = four_h // 4
    # TODO(synk): cast padded weights to bfloat16 on v6e/v7x (keep f32 accumulation and
    # f32 gate math); kept f32 here so the demo check against the f32 reference is tight.
    w_ih_t = jnp.zeros((d_in_pad, 4 * Hp), jnp.float32)
    w_hh_t = jnp.zeros((Hp, 4 * Hp), jnp.float32)
    bias = jnp.zeros((1, 4 * Hp), jnp.float32)
    for g in range(4):
        w_ih_t = w_ih_t.at[:d_in, g * Hp:g * Hp + H].set(w_ih[g * H:(g + 1) * H, :].T)
        w_hh_t = w_hh_t.at[:H, g * Hp:g * Hp + H].set(w_hh[g * H:(g + 1) * H, :].T)
        bias = bias.at[0, g * Hp:g * Hp + H].set(
            b_ih[g * H:(g + 1) * H] + b_hh[g * H:(g + 1) * H])
    return w_ih_t, w_hh_t, bias


def lstm_forward(x, layer_params, fc_w, fc_b):
    B, T, _ = x.shape
    H = fc_w.shape[1]
    Hp = _round_up(H, 128)
    num_layers = len(layer_params)

    # One-time layout plumbing: batch-major (B,T,D) -> time-major (T,B,D).
    h_tm = jnp.transpose(x.astype(jnp.float32), (1, 0, 2))

    h_last = None
    for li, (w_ih, w_hh, b_ih, b_hh) in enumerate(layer_params):
        d_in = h_tm.shape[-1]
        w_ih_t, w_hh_t, bias = _pad_lstm_params(w_ih, w_hh, b_ih, b_hh, Hp, d_in)

        # Hoisted input projection: one big (T*B, d_in) @ (d_in, 4Hp) MXU matmul,
        # moving ~half the FLOPs off the serial recurrence chain.
        gx_rows = _input_projection(h_tm.reshape(T * B, d_in), w_ih_t, bias)
        gx_tm = gx_rows.reshape(T, B, 4 * Hp)

        if li == num_layers - 1:
            # Last layer: only h_T is needed downstream — skip the (T,B,Hp) HBM write.
            h_last = _lstm_recurrence(gx_tm, w_hh_t, Hp, emit_hseq=False)
        else:
            # TODO(synk): wavefront-fuse consecutive layers over time chunks to avoid the
            # full (T,B,Hp) HBM round-trip between layers.
            h_tm, h_last = _lstm_recurrence(gx_tm, w_hh_t, Hp, emit_hseq=True)

    # FC + softmax on the final hidden state (zero-padded rows of fc_w_t are exact).
    O = fc_w.shape[0]
    fc_w_t = jnp.zeros((Hp, O), jnp.float32).at[:H, :].set(fc_w.T)
    vmem = pl.BlockSpec(memory_space=pltpu.MemorySpace.VMEM)
    out = pl.pallas_call(
        fc_softmax_kernel,
        out_shape=jax.ShapeDtypeStruct((B, O), jnp.float32),
        in_specs=[vmem, vmem, vmem],
        out_specs=vmem,
        compiler_params=pltpu.CompilerParams(vmem_limit_bytes=_VMEM_LIMIT),
    )(h_last, fc_w_t, fc_b[None, :].astype(jnp.float32))
    return out


# ---------------------------------------------------------------------------
# Pure-JAX reference (correctness check only)
# ---------------------------------------------------------------------------

def lstm_forward_ref(x, layer_params, fc_w, fc_b):
    h_seq = x.astype(jnp.float32)
    for (w_ih, w_hh, b_ih, b_hh) in layer_params:
        B, T, _ = h_seq.shape
        H = w_hh.shape[1]
        h = jnp.zeros((B, H), jnp.float32)
        c = jnp.zeros((B, H), jnp.float32)
        outs = []
        for t in range(T):
            gates = h_seq[:, t, :] @ w_ih.T + h @ w_hh.T + b_ih + b_hh
            i = jax.nn.sigmoid(gates[:, :H])
            f = jax.nn.sigmoid(gates[:, H:2 * H])
            g = jnp.tanh(gates[:, 2 * H:3 * H])
            o = jax.nn.sigmoid(gates[:, 3 * H:])
            c = f * c + i * g
            h = o * jnp.tanh(c)
            outs.append(h)
        h_seq = jnp.stack(outs, axis=1)
    logits = h_seq[:, -1, :] @ fc_w.T + fc_b
    return jax.nn.softmax(logits, axis=1)


# ---------------------------------------------------------------------------
# Deterministic parameter init (PyTorch-style uniform(-1/sqrt(H), 1/sqrt(H)))
# ---------------------------------------------------------------------------

def init_params(key, input_size, hidden_size, num_layers, output_dim):
    k = 1.0 / math.sqrt(hidden_size)
    layer_params = []
    for layer in range(num_layers):
        d_in = input_size if layer == 0 else hidden_size
        key, k1, k2, k3, k4 = jax.random.split(key, 5)
        w_ih = jax.random.uniform(k1, (4 * hidden_size, d_in), jnp.float32, -k, k)
        w_hh = jax.random.uniform(k2, (4 * hidden_size, hidden_size), jnp.float32, -k, k)
        b_ih = jax.random.uniform(k3, (4 * hidden_size,), jnp.float32, -k, k)
        b_hh = jax.random.uniform(k4, (4 * hidden_size,), jnp.float32, -k, k)
        layer_params.append((w_ih, w_hh, b_ih, b_hh))
    key, k5, k6 = jax.random.split(key, 3)
    fc_w = jax.random.uniform(k5, (output_dim, hidden_size), jnp.float32, -k, k)
    fc_b = jax.random.uniform(k6, (output_dim,), jnp.float32, -k, k)
    return layer_params, fc_w, fc_b


if __name__ == "__main__":
    B, T = 2, 8
    input_size, hidden_size, num_layers, output_dim = 16, 32, 2, 4

    key = jax.random.PRNGKey(0)
    key, xkey = jax.random.split(key)
    x = jax.random.normal(xkey, (B, T, input_size), jnp.float32)

    layer_params, fc_w, fc_b = init_params(key, input_size, hidden_size,
                                           num_layers, output_dim)

    out = lstm_forward(x, layer_params, fc_w, fc_b)
    out = jax.block_until_ready(out)

    ref = lstm_forward_ref(x, layer_params, fc_w, fc_b)
    assert out.shape == (B, output_dim)
    assert jnp.allclose(out, ref, atol=2e-5, rtol=2e-5), "mismatch vs reference"
    assert jnp.allclose(jnp.sum(out, axis=1), jnp.ones((B,)), atol=1e-5)

    print("KERNEL_OK")
</pallas_src>

<mosaic_0001>
module attributes {stable_mosaic.version = 11 : i64} {
  func.func @input_proj_kernel(%arg0: i32, %arg1: i32, %arg2: memref<16x16xf32, #tpu.memory_space<vmem>>, %arg3: memref<16x512xf32, #tpu.memory_space<vmem>>, %arg4: memref<1x512xf32, #tpu.memory_space<vmem>>, %arg5: memref<16x512xf32, #tpu.memory_space<vmem>>) attributes {dimension_semantics = [#tpu.dimension_semantics<parallel>, #tpu.dimension_semantics<parallel>], iteration_bounds = array<i64: 1, 1>, scalar_prefetch = 0 : i64, scratch_operands = 0 : i64, tpu.core_type = #tpu.core_type<tc>, window_params = [{transform_indices = @transform_0, window_bounds = array<i64: 16, 16>}, {transform_indices = @transform_1, window_bounds = array<i64: 16, 512>}, {transform_indices = @transform_2, window_bounds = array<i64: 1, 512>}, {transform_indices = @transform_3, window_bounds = array<i64: 16, 512>}]} {
    %c0 = arith.constant 0 : index
    %c0_0 = arith.constant 0 : index
    %0 = vector.load %arg2[%c0, %c0_0] : memref<16x16xf32, #tpu.memory_space<vmem>>, vector<16x16xf32>
    %c0_1 = arith.constant 0 : index
    %c0_2 = arith.constant 0 : index
    %1 = vector.load %arg3[%c0_1, %c0_2] : memref<16x512xf32, #tpu.memory_space<vmem>>, vector<16x512xf32>
    %cst = arith.constant dense<0.000000e+00> : vector<16x512xf32>
    %2 = tpu.matmul %0, %1, %cst {dimension_numbers = #tpu.dot_dimension_numbers<[1], [0], [0], [1], [0, 0, 1, 1], [], []>} : vector<16x16xf32>, vector<16x512xf32>, vector<16x512xf32> -> vector<16x512xf32>
    %c0_3 = arith.constant 0 : index
    %c0_4 = arith.constant 0 : index
    %3 = vector.load %arg4[%c0_3, %c0_4] : memref<1x512xf32, #tpu.memory_space<vmem>>, vector<1x512xf32>
    %4 = vector.broadcast %3 : vector<1x512xf32> to vector<16x512xf32>
    %5 = arith.addf %2, %4 : vector<16x512xf32>
    %c0_5 = arith.constant 0 : index
    %c0_6 = arith.constant 0 : index
    %6 = vector.load %arg5[%c0_5, %c0_6] : memref<16x512xf32, #tpu.memory_space<vmem>>, vector<16x512xf32>
    tpu.vector_store %arg5[%c0_5, %c0_6], %5 {strides = array<i32>} : memref<16x512xf32, #tpu.memory_space<vmem>>, vector<16x512xf32>,
    return
  }
  func.func @transform_0(%arg0: i32, %arg1: i32) -> (i32, i32) {
    %c0_i32 = arith.constant 0 : i32
    %c0_i32_0 = arith.constant 0 : i32
    return %arg0, %c0_i32 : i32, i32
  }
  func.func @transform_1(%arg0: i32, %arg1: i32) -> (i32, i32) {
    %c0_i32 = arith.constant 0 : i32
    %c0_i32_0 = arith.constant 0 : i32
    return %c0_i32, %arg1 : i32, i32
  }
  func.func @transform_2(%arg0: i32, %arg1: i32) -> (i32, i32) {
    %c0_i32 = arith.constant 0 : i32
    %c0_i32_0 = arith.constant 0 : i32
    return %c0_i32, %arg1 : i32, i32
  }
  func.func @transform_3(%arg0: i32, %arg1: i32) -> (i32, i32) {
    %c0_i32 = arith.constant 0 : i32
    return %arg0, %arg1 : i32, i32
  }
}

</mosaic_0001>

<llo_original>
// kernel: tpu_custom_call.1
$region0: #{tpu_custom_call.1}
  #allocation0 [shape = 'u32[]', space=smem, size = 0x4, offset = 0x4, fixed_abs, tag = 'smem constant byte address 0x4 - core index']
  #allocation1 [shape = 'u32[144,128]{1,0:T(1,128)}', space=vmem, size = 0x12000, scoped, tag = 'internal scratch']
  %s0 = inlined_call_operand.hbm [shape: f32[16,16], index: 0, kind: input, shape index: {}]
  %s1 = inlined_call_operand.hbm [shape: f32[16,512], index: 1, kind: input, shape index: {}]
  %s2 = inlined_call_operand.hbm [shape: f32[1,512], index: 2, kind: input, shape index: {}]
  %s3 = inlined_call_operand.hbm [shape: f32[16,512], index: 3, kind: output, shape index: {}]
  %s4 = sld [smem:[#allocation0]]
  $region34: #{tpu_custom_call.1} parent=0
    _
  %s6 = ssub.s32 1, %s4
  %s7 = scalar_select 0, %s6, %s4
  $region1: #{tpu_custom_call.1} parent=0
    #allocation2 [shape = 'u8[8192]{0}', space=vmem, size = 0x2000, scoped, tag = 'input window, operand 0, single buffered']
    #allocation3 [shape = 's32[1]{0}', space=sflag, size = 0x4, scoped, tag = 'scoped memory for tpu_custom_call.1']
    #allocation4 [shape = 's32[1]{0}', space=sflag, size = 0x4, scoped, tag = 'scoped memory for tpu_custom_call.1']
    #allocation5 [shape = 'u8[32768]{0}', space=vmem, size = 0x8000, scoped, tag = 'input window, operand 1, single buffered']
    #allocation6 [shape = 's32[1]{0}', space=sflag, size = 0x4, scoped, tag = 'scoped memory for tpu_custom_call.1']
    #allocation7 [shape = 'u8[2048]{0}', space=vmem, size = 0x800, scoped, tag = 'input window, operand 2, single buffered']
    #allocation8 [shape = 'u8[32768]{0}', space=vmem, size = 0x8000, scoped, tag = 'output window, operand 0, single buffered']
    %8 = vsyncpa [#allocation3], 0
    %9 = vsyncpa [#allocation6], 0
    %10 = vsyncpa [#allocation4], 0
    // Predicated region
    $region2: #{tpu_custom_call.1} parent=1 // pred_check
      _
    $region3: #{tpu_custom_call.1} parent=1 // pred_check_branch
      %12 = sbr.rel (0) target = $region5
    $region4: #{tpu_custom_call.1} parent=1 // pred_region
      %s14 = ssub.s32 256, 256
      %15 = vsyncadd [#allocation3], %s14
      %s16 = sshll.u32 [#allocation2], 4
      %s17 = int_to_ptr.vmem [resolvable:$true] %s16
      %22 = dma.hbm_to_vmem [thread:$0]  %s0, 256, %s17, [#allocation3], 128, 128, 8
    $region5: #{tpu_custom_call.1} parent=1 // pred_fallthru
      _
    // Predicated region
    $region6: #{tpu_custom_call.1} parent=1 // pred_check
      _
    $region7: #{tpu_custom_call.1} parent=1 // pred_check_branch
      %24 = sbr.rel (0) target = $region9
    $region8: #{tpu_custom_call.1} parent=1 // pred_region
      %s26 = ssub.s32 1024, 1024
      %27 = vsyncadd [#allocation6], %s26
      %s28 = sshll.u32 [#allocation5], 4
      %s29 = int_to_ptr.vmem [resolvable:$true] %s28
      %34 = dma.hbm_to_vmem [thread:$0]  %s1, 1024, %s29, [#allocation6], 512, 512, 32
    $region9: #{tpu_custom_call.1} parent=1 // pred_fallthru
      _
    // Predicated region
    $region10: #{tpu_custom_call.1} parent=1 // pred_check
      _
    $region11: #{tpu_custom_call.1} parent=1 // pred_check_branch
      %36 = sbr.rel (0) target = $region13
    $region12: #{tpu_custom_call.1} parent=1 // pred_region
      %s38 = ssub.s32 64, 64
      %39 = vsyncadd [#allocation6], %s38
      %s41 = sshll.u32 [#allocation7], 4
      %s42 = int_to_ptr.vmem [resolvable:$true] %s41
      %44 = dma.hbm_to_vmem [thread:$0]  %s2, 64, %s42, [#allocation6]
    $region13: #{tpu_custom_call.1} parent=1 // pred_fallthru
      _
    // Predicated region
    $region14: #{tpu_custom_call.1} parent=1 // pred_check
      _
    $region15: #{tpu_custom_call.1} parent=1 // pred_check_branch
      %46 = sbr.rel (0) target = $region17
    $region16: #{tpu_custom_call.1} parent=1 // pred_region
      %47 = dma.done [#allocation3], 256
    $region17: #{tpu_custom_call.1} parent=1 // pred_fallthru
      _
    // Predicated region
    $region18: #{tpu_custom_call.1} parent=1 // pred_check
      _
    $region19: #{tpu_custom_call.1} parent=1 // pred_check_branch
      %49 = sbr.rel (0) target = $region21
    $region20: #{tpu_custom_call.1} parent=1 // pred_region
      %50 = dma.done [#allocation6], 1024
    $region21: #{tpu_custom_call.1} parent=1 // pred_fallthru
      _
    // Predicated region
    $region22: #{tpu_custom_call.1} parent=1 // pred_check
      _
    $region23: #{tpu_custom_call.1} parent=1 // pred_check_branch
      %52 = sbr.rel (0) target = $region25
    $region24: #{tpu_custom_call.1} parent=1 // pred_region
      %53 = dma.done [#allocation6], 64
    $region25: #{tpu_custom_call.1} parent=1 // pred_fallthru
      _
    %v54 = vld [vmem:[#allocation2] sm:$0xff]
    %v55 = vld [vmem:[#allocation2 + $0x8] sm:$0xff]
    %v56 = vld [vmem:[#allocation5] sm:$0xff]
    %v57 = vld [vmem:[#allocation5 + $0x8] sm:$0xff]
    %v58 = vld [vmem:[#allocation5 + $0x10] sm:$0xff]
    %v59 = vld [vmem:[#allocation5 + $0x18] sm:$0xff]
    %v60 = vld [vmem:[#allocation5 + $0x20] sm:$0xff]
    %v61 = vld [vmem:[#allocation5 + $0x28] sm:$0xff]
    %v62 = vld [vmem:[#allocation5 + $0x30] sm:$0xff]
    %v63 = vld [vmem:[#allocation5 + $0x38] sm:$0xff]
    %v64 = vld [vmem:[#allocation7] sm:$0xf]
    %v66 = vlaneseq
    %v67 = vshrl.u32 %v66, 7
    %v68 = vsub.s32 0, %v67
    %v69 = vrot.slane %v64, %v68
    %v70 = vlaneseq
    %v71 = vshrl.u32 %v70, 7
    %v72 = vsub.s32 1, %v71
    %v73 = vrot.slane %v64, %v72
    %v74 = vlaneseq
    %v75 = vshrl.u32 %v74, 7
    %v76 = vsub.s32 2, %v75
    %v77 = vrot.slane %v64, %v76
    %v78 = vlaneseq
    %v79 = vshrl.u32 %v78, 7
    %v80 = vsub.s32 3, %v79
    %v81 = vrot.slane %v64, %v80
    %vm86 = vcmask 130048
    %v88 = vsel %vm86, %v54, 0
    %v91 = vsel %vm86, %v55, 0
    %93 = vmatprep.subr.mxu0 0.0
    %94 = vmatpush1.msra.mxu0 0.0
    %95 = vmatprep.subr.mxu0 0.0
    %96 = vmatpush1.msra.mxu0 0.0
    %97 = vmatprep.subr.mxu0 0.0
    %98 = vmatpush1.msra.mxu0 0.0
    %99 = vmatprep.subr.mxu0 0.0
    %100 = vmatpush1.msra.mxu0 0.0
    %101 = vmatprep.subr.mxu0 0.0
    %102 = vmatpush1.msra.mxu0 0.0
    %103 = vmatprep.subr.mxu0 0.0
    %104 = vmatpush1.msra.mxu0 0.0
    %105 = vmatprep.subr.mxu0 0.0
    %106 = vmatpush1.msra.mxu0 0.0
    %107 = vmatprep.subr.mxu0 0.0
    %108 = vmatpush1.msra.mxu0 0.0
    %109 = vmatprep.subr.mxu0 0.0
    %110 = vmatpush1.msra.mxu0 0.0
    %111 = vmatprep.subr.mxu0 0.0
    %112 = vmatpush1.msra.mxu0 0.0
    %113 = vmatprep.subr.mxu0 0.0
    %114 = vmatpush1.msra.mxu0 0.0
    %115 = vmatprep.subr.mxu0 0.0
    %116 = vmatpush1.msra.mxu0 0.0
    %117 = vmatprep.subr.mxu0 0.0
    %118 = vmatpush1.msra.mxu0 0.0
    %119 = vmatprep.subr.mxu0 0.0
    %120 = vmatpush1.msra.mxu0 0.0
    %121 = vmatprep.subr.mxu0 %v61
    %122 = vmatpush1.msra.mxu0 %v60
    %123 = vmatprep.subr.mxu0 %v57
    %124 = vmatpush1.msra.mxu0 %v56
    %125 = vmatprep.subr.mxu0 0.0
    %126 = vmatpush2.msra.mxu0 0.0
    %127 = vmatprep.subr.mxu0 0.0
    %128 = vmatpush2.msra.mxu0 0.0
    %129 = vmatprep.subr.mxu0 0.0
    %130 = vmatpush2.msra.mxu0 0.0
    %131 = vmatprep.subr.mxu0 0.0
    %132 = vmatpush2.msra.mxu0 0.0
    %133 = vmatprep.subr.mxu0 0.0
    %134 = vmatpush2.msra.mxu0 0.0
    %135 = vmatprep.subr.mxu0 0.0
    %136 = vmatpush2.msra.mxu0 0.0
    %137 = vmatprep.subr.mxu0 0.0
    %138 = vmatpush2.msra.mxu0 0.0
    %139 = vmatprep.subr.mxu0 0.0
    %140 = vmatpush2.msra.mxu0 0.0
    %141 = vmatprep.subr.mxu0 0.0
    %142 = vmatpush2.msra.mxu0 0.0
    %143 = vmatprep.subr.mxu0 0.0
    %144 = vmatpush2.msra.mxu0 0.0
    %145 = vmatprep.subr.mxu0 0.0
    %146 = vmatpush2.msra.mxu0 0.0
    %147 = vmatprep.subr.mxu0 0.0
    %148 = vmatpush2.msra.mxu0 0.0
    %149 = vmatprep.subr.mxu0 0.0
    %150 = vmatpush2.msra.mxu0 0.0
    %151 = vmatprep.subr.mxu0 0.0
    %152 = vmatpush2.msra.mxu0 0.0
    %153 = vmatprep.subr.mxu0 0.0
    %154 = vmatpush2.msra.mxu0 0.0
    %155 = vmatprep.subr.mxu0 0.0
    %156 = vmatpush2.msra.mxu0 0.0
    %157 = vmatprep.mubr.f32.mxu0 0.0
    %158 = vmatmul.mubr.f32.gmra.mxu0 %v88
    %v159 = vpop.f32.mrf.mxu0
    %v160 = vadd.f32 %v69, %v159
    %v161 = vpop.f32.mrf.mxu0
    %v162 = vadd.f32 %v73, %v161
    %163 = vmatprep.mubr.f32.mxu0 0.0
    %164 = vmatmul.mubr.f32.gmra.mxu0 %v91
    %v165 = vpop.f32.mrf.mxu0
    %v166 = vadd.f32 %v69, %v165
    %v167 = vpop.f32.mrf.mxu0
    %v168 = vadd.f32 %v73, %v167
    %169 = vdwg.mxu0
    %170 = vmatprep.subr.mxu0 0.0
    %171 = vmatpush1.msra.mxu0 0.0
    %172 = vmatprep.subr.mxu0 0.0
    %173 = vmatpush1.msra.mxu0 0.0
    %174 = vmatprep.subr.mxu0 0.0
    %175 = vmatpush1.msra.mxu0 0.0
    %176 = vmatprep.subr.mxu0 0.0
    %177 = vmatpush1.msra.mxu0 0.0
    %178 = vmatprep.subr.mxu0 0.0
    %179 = vmatpush1.msra.mxu0 0.0
    %180 = vmatprep.subr.mxu0 0.0
    %181 = vmatpush1.msra.mxu0 0.0
    %182 = vmatprep.subr.mxu0 0.0
    %183 = vmatpush1.msra.mxu0 0.0
    %184 = vmatprep.subr.mxu0 0.0
    %185 = vmatpush1.msra.mxu0 0.0
    %186 = vmatprep.subr.mxu0 0.0
    %187 = vmatpush1.msra.mxu0 0.0
    %188 = vmatprep.subr.mxu0 0.0
    %189 = vmatpush1.msra.mxu0 0.0
    %190 = vmatprep.subr.mxu0 0.0
    %191 = vmatpush1.msra.mxu0 0.0
    %192 = vmatprep.subr.mxu0 0.0
    %193 = vmatpush1.msra.mxu0 0.0
    %194 = vmatprep.subr.mxu0 0.0
    %195 = vmatpush1.msra.mxu0 0.0
    %196 = vmatprep.subr.mxu0 0.0
    %197 = vmatpush1.msra.mxu0 0.0
    %198 = vmatprep.subr.mxu0 %v63
    %199 = vmatpush1.msra.mxu0 %v62
    %200 = vmatprep.subr.mxu0 %v59
    %201 = vmatpush1.msra.mxu0 %v58
    %202 = vmatprep.subr.mxu0 0.0
    %203 = vmatpush2.msra.mxu0 0.0
    %204 = vmatprep.subr.mxu0 0.0
    %205 = vmatpush2.msra.mxu0 0.0
    %206 = vmatprep.subr.mxu0 0.0
    %207 = vmatpush2.msra.mxu0 0.0
    %208 = vmatprep.subr.mxu0 0.0
    %209 = vmatpush2.msra.mxu0 0.0
    %210 = vmatprep.subr.mxu0 0.0
    %211 = vmatpush2.msra.mxu0 0.0
    %212 = vmatprep.subr.mxu0 0.0
    %213 = vmatpush2.msra.mxu0 0.0
    %214 = vmatprep.subr.mxu0 0.0
    %215 = vmatpush2.msra.mxu0 0.0
    %216 = vmatprep.subr.mxu0 0.0
    %217 = vmatpush2.msra.mxu0 0.0
    %218 = vmatprep.subr.mxu0 0.0
    %219 = vmatpush2.msra.mxu0 0.0
    %220 = vmatprep.subr.mxu0 0.0
    %221 = vmatpush2.msra.mxu0 0.0
    %222 = vmatprep.subr.mxu0 0.0
    %223 = vmatpush2.msra.mxu0 0.0
    %224 = vmatprep.subr.mxu0 0.0
    %225 = vmatpush2.msra.mxu0 0.0
    %226 = vmatprep.subr.mxu0 0.0
    %227 = vmatpush2.msra.mxu0 0.0
    %228 = vmatprep.subr.mxu0 0.0
    %229 = vmatpush2.msra.mxu0 0.0
    %230 = vmatprep.subr.mxu0 0.0
    %231 = vmatpush2.msra.mxu0 0.0
    %232 = vmatprep.subr.mxu0 0.0
    %233 = vmatpush2.msra.mxu0 0.0
    %234 = vmatprep.mubr.f32.mxu0 0.0
    %235 = vmatmul.mubr.f32.gmra.mxu0 %v88
    %v236 = vpop.f32.mrf.mxu0
    %v237 = vadd.f32 %v77, %v236
    %v238 = vpop.f32.mrf.mxu0
    %v239 = vadd.f32 %v81, %v238
    %240 = vmatprep.mubr.f32.mxu0 0.0
    %241 = vmatmul.mubr.f32.gmra.mxu0 %v91
    %v242 = vpop.f32.mrf.mxu0
    %v243 = vadd.f32 %v77, %v242
    %v244 = vpop.f32.mrf.mxu0
    %v245 = vadd.f32 %v81, %v244
    %246 = vdwg.mxu0
    %247 = vst [vmem:[#allocation8] sm:$0xff] %v160
    %248 = vst [vmem:[#allocation8 + $0x8] sm:$0xff] %v162
    %249 = vst [vmem:[#allocation8 + $0x10] sm:$0xff] %v237
    %250 = vst [vmem:[#allocation8 + $0x18] sm:$0xff] %v239
    %251 = vst [vmem:[#allocation8 + $0x20] sm:$0xff] %v166
    %252 = vst [vmem:[#allocation8 + $0x28] sm:$0xff] %v168
    %253 = vst [vmem:[#allocation8 + $0x30] sm:$0xff] %v243
    %254 = vst [vmem:[#allocation8 + $0x38] sm:$0xff] %v245
    // Predicated region
    $region26: #{tpu_custom_call.1} parent=1 // pred_check
      _
    $region27: #{tpu_custom_call.1} parent=1 // pred_check_branch
      %256 = sbr.rel (0) target = $region29
    $region28: #{tpu_custom_call.1} parent=1 // pred_region
      %s258 = ssub.s32 1024, 1024
      %259 = vsyncadd [#allocation4], %s258
      %s260 = sshll.u32 [#allocation8], 4
      %s261 = int_to_ptr.vmem [resolvable:$true] %s260
      %266 = dma.vmem_to_hbm [thread:$0]  %s261, 1024, %s3, [#allocation4], 512, 512, 32
    $region29: #{tpu_custom_call.1} parent=1 // pred_fallthru
      _
    // Predicated region
    $region30: #{tpu_custom_call.1} parent=1 // pred_check
      _
    $region31: #{tpu_custom_call.1} parent=1 // pred_check_branch
      %268 = sbr.rel (0) target = $region33
    $region32: #{tpu_custom_call.1} parent=1 // pred_region
      %269 = dma.done [#allocation4], 1024
    $region33: #{tpu_custom_call.1} parent=1 // pred_fallthru
      _
    %270 = vsyncpa [#allocation3], 1
    %271 = vsyncpa [#allocation6], 1
    %272 = vsyncpa [#allocation4], 1

</llo_original>
